<compile_context>
chip_gen: v7x
topology: tpu7x:2x2x1
jax: 0.10.0
libtpu: 0.0.40
codegen_flags: <defaults>
</compile_context>

<pallas_src>
import functools

import jax
import jax.numpy as jnp
from jax import lax
from jax.experimental import pallas as pl
from jax.experimental.pallas import tpu as pltpu

LANES = 128


def _lif_kernel(x_ref, out_ref, mem_ref, *, Vth, decay, reset, tb, strip, n_strips):
    # Membrane potential persists in VMEM scratch across the (sequential,
    # innermost) time grid axis; re-initialize once per element tile.
    @pl.when(pl.program_id(1) == 0)
    def _():
        mem_ref[...] = jnp.zeros_like(mem_ref)

    def strip_body(s, carry):
        r0 = pl.multiple_of(s * strip, strip)
        rows = pl.ds(r0, strip)
        mem = mem_ref[rows, :]                       # (strip, 128) f32 — 1–4 vregs live
        for t in range(tb):                          # static unroll over time steps
            mem = mem * decay + x_ref[t, rows, :].astype(jnp.float32)
            # Straight-through surrogate forward, bit-compatible with PyTorch:
            #   out_i = (out_s.float() - out_bp).detach() + out_bp
            out_s = (mem > Vth).astype(jnp.float32)
            out_bp = jnp.clip(mem, Vth - 1.0, Vth + 1.0) * 0.5
            out_i = (out_s - out_bp) + out_bp
            out_ref[t, rows, :] = out_i.astype(out_ref.dtype)
            if reset:
                mem = mem * (1.0 - out_i)
            else:
                # torch.where(out_i.bool(), mem - Vth, mem)
                mem = jnp.where(out_i != 0.0, mem - Vth, mem)
        mem_ref[rows, :] = mem                       # write strip back once
        return carry

    lax.fori_loop(0, n_strips, strip_body, 0, unroll=False)


def _round_up(a, b):
    return ((a + b - 1) // b) * b


def lif_forward(x, Vth=1.0, decay=0.25, reset=True, *,
                tile_m_cap=512, target_block_bytes=2 << 20, tb_cap=32):
    """x: [T, ...] floating point.  Returns spikes with x's shape and dtype."""
    if not jnp.issubdtype(x.dtype, jnp.floating):
        x = x.astype(jnp.float32)
    out_dtype = x.dtype
    itemsize = jnp.dtype(x.dtype).itemsize

    T = x.shape[0]
    step_shape = x.shape[1:]
    n_elem = 1
    for d in step_shape:
        n_elem *= d

    # --- Lane-dense view [T, m_raw, 128]; free (no HBM copy) when aligned. ---
    if n_elem % LANES == 0:
        m_raw = n_elem // LANES
        x_tiled = x.reshape(T, m_raw, LANES)
        lane_pad = 0
    else:
        # TODO(synk): lane-unaligned per-step sizes still take one pad copy; a
        # flat [T, n_elem] kernel variant with ragged-lane boundary blocks
        # would remove it.  (Conv feature maps are normally 128-aligned.)
        m_raw = (n_elem + LANES - 1) // LANES
        lane_pad = m_raw * LANES - n_elem
        x_tiled = jnp.pad(x.reshape(T, n_elem), ((0, 0), (0, lane_pad)))
        x_tiled = x_tiled.reshape(T, m_raw, LANES)

    # --- Element tiling: >= 2 tiles when possible so both v7x TCs stream. ---
    if m_raw > tile_m_cap:
        tile_m = tile_m_cap
    elif m_raw >= 16:
        tile_m = _round_up((m_raw + 1) // 2, 8)
    elif m_raw >= 8:
        tile_m = 8
    else:
        tile_m = m_raw            # tiny tensor: single partial-vreg tile

    # --- Strip size for in-kernel strip-mining (mem strip stays in vregs). ---
    if tile_m % 32 == 0:
        strip = 32
    elif tile_m % 16 == 0:
        strip = 16
    elif tile_m % 8 == 0:
        strip = 8
    else:
        strip = tile_m
    n_strips = tile_m // strip

    # --- Time batching: move ~target_block_bytes per grid step (capped). ---
    step_bytes = tile_m * LANES * itemsize
    tb = max(1, min(T, target_block_bytes // step_bytes, tb_cap))

    grid = (pl.cdiv(m_raw, tile_m), pl.cdiv(T, tb))

    kernel = functools.partial(
        _lif_kernel, Vth=float(Vth), decay=float(decay), reset=bool(reset),
        tb=tb, strip=strip, n_strips=n_strips)

    # VMEM budget (worst case tile_m=512, tb=8, f32): 2 MiB in + 2 MiB out,
    # double-buffered, + 256 KiB membrane scratch ≈ 8.25 MiB — under the
    # default scoped-VMEM limit on v5e (16 MiB) and v6e/v7x (32 MiB).
    out_tiled = pl.pallas_call(
        kernel,
        out_shape=jax.ShapeDtypeStruct((T, m_raw, LANES), out_dtype),
        grid_spec=pltpu.PrefetchScalarGridSpec(
            num_scalar_prefetch=0,
            grid=grid,
            in_specs=[pl.BlockSpec((tb, tile_m, LANES), lambda m, t: (t, m, 0))],
            out_specs=pl.BlockSpec((tb, tile_m, LANES), lambda m, t: (t, m, 0)),
            scratch_shapes=[pltpu.VMEM((tile_m, LANES), jnp.float32)],
        ),
        compiler_params=pltpu.CompilerParams(
            # element tiles independent (megacore-shardable); time is sequential
            dimension_semantics=("parallel", "arbitrary"),
        ),
    )(x_tiled)

    out_flat = out_tiled.reshape(T, m_raw * LANES)
    if lane_pad:
        out_flat = out_flat[:, :n_elem]
    return out_flat.reshape((T,) + step_shape)


def lif_reference(x, Vth=1.0, decay=0.25, reset=True):
    """Pure-JAX reference mirroring the PyTorch forward."""
    x = x.astype(jnp.float32)

    def step(mem, xt):
        mem = mem * decay + xt
        out_s = (mem > Vth).astype(jnp.float32)
        out_bp = jnp.clip(mem, Vth - 1.0, Vth + 1.0) * 0.5
        out_i = (out_s - out_bp) + out_bp
        if reset:
            mem = mem * (1.0 - out_i)
        else:
            mem = jnp.where(out_i != 0.0, mem - Vth, mem)
        return mem, out_i

    _, out = jax.lax.scan(step, jnp.zeros_like(x[0]), x)
    return out


if __name__ == "__main__":
    # x: [T, N, C, H, W] = [8, 2, 4, 16, 16], time-major NCHW per step.
    key = jax.random.PRNGKey(0)
    x = jax.random.normal(key, (8, 2, 4, 16, 16), dtype=jnp.float32) * 1.5

    out = jax.block_until_ready(lif_forward(x, Vth=1.0, decay=0.25, reset=True))
    ref = lif_reference(x, Vth=1.0, decay=0.25, reset=True)
    assert out.shape == x.shape and out.dtype == x.dtype
    assert jnp.allclose(out, ref, atol=1e-6, rtol=1e-6), "mismatch vs reference (reset)"

    # Also exercise the no-reset branch.
    out2 = jax.block_until_ready(lif_forward(x, Vth=1.0, decay=0.25, reset=False))
    ref2 = lif_reference(x, Vth=1.0, decay=0.25, reset=False)
    assert jnp.allclose(out2, ref2, atol=1e-6, rtol=1e-6), "mismatch vs reference (no reset)"

    print("KERNEL_OK")
</pallas_src>

<mosaic_0001>
module attributes {stable_mosaic.version = 11 : i64} {
  func.func @_lif_kernel(%arg0: i32, %arg1: i32, %arg2: memref<8x8x128xf32, #tpu.memory_space<vmem>>, %arg3: memref<8x8x128xf32, #tpu.memory_space<vmem>>, %arg4: memref<8x128xf32, #tpu.memory_space<vmem>>) attributes {dimension_semantics = [#tpu.dimension_semantics<parallel>, #tpu.dimension_semantics<arbitrary>], iteration_bounds = array<i64: 2, 1>, scalar_prefetch = 0 : i64, scratch_operands = 1 : i64, tpu.core_type = #tpu.core_type<tc>, window_params = [{transform_indices = @transform_0, window_bounds = array<i64: 8, 8, 128>}, {transform_indices = @transform_1, window_bounds = array<i64: 8, 8, 128>}]} {
    %c0_i32 = arith.constant 0 : i32
    %0 = arith.cmpi eq, %arg1, %c0_i32 : i32
    %1 = arith.extui %0 : i1 to i32
    %c0_i32_0 = arith.constant 0 : i32
    %2 = arith.cmpi ne, %1, %c0_i32_0 : i32
    scf.if %2 {
      %cst_75 = arith.constant 0.000000e+00 : f32
      %209 = vector.broadcast %cst_75 : f32 to vector<8x128xf32>
      %c0_76 = arith.constant 0 : index
      %c0_77 = arith.constant 0 : index
      %210 = vector.load %arg4[%c0_76, %c0_77] : memref<8x128xf32, #tpu.memory_space<vmem>>, vector<8x128xf32>
      tpu.vector_store %arg4[%c0_76, %c0_77], %209 {strides = array<i32>} : memref<8x128xf32, #tpu.memory_space<vmem>>, vector<8x128xf32>,
    } else {
    }
    %c0_i32_1 = arith.constant 0 : i32
    %c8_i32 = arith.constant 8 : i32
    %3 = arith.muli %c0_i32_1, %c8_i32 : i32
    %4 = tpu.assume_multiple %3, 8 : i32
    %5 = arith.index_cast %4 : i32 to index
    %c0 = arith.constant 0 : index
    %6 = vector.load %arg4[%5, %c0] : memref<8x128xf32, #tpu.memory_space<vmem>>, vector<8x128xf32>
    %cst = arith.constant 2.500000e-01 : f32
    %7 = vector.broadcast %cst : f32 to vector<8x128xf32>
    %8 = arith.mulf %6, %7 : vector<8x128xf32>
    %c0_2 = arith.constant 0 : index
    %9 = arith.index_cast %4 : i32 to index
    %c0_3 = arith.constant 0 : index
    %10 = vector.load %arg2[%c0_2, %9, %c0_3] : memref<8x8x128xf32, #tpu.memory_space<vmem>>, vector<1x8x128xf32>
    %11 = vector.shape_cast %10 : vector<1x8x128xf32> to vector<8x128xf32>
    %12 = arith.addf %8, %11 : vector<8x128xf32>
    %cst_4 = arith.constant 1.000000e+00 : f32
    %13 = vector.broadcast %cst_4 : f32 to vector<8x128xf32>
    %14 = arith.cmpf ogt, %12, %13 : vector<8x128xf32>
    %15 = arith.extui %14 : vector<8x128xi1> to vector<8x128xi32>
    %16 = arith.sitofp %15 : vector<8x128xi32> to vector<8x128xf32>
    %cst_5 = arith.constant 0.000000e+00 : f32
    %cst_6 = arith.constant 2.000000e+00 : f32
    %17 = vector.broadcast %cst_5 : f32 to vector<8x128xf32>
    %18 = arith.maximumf %17, %12 : vector<8x128xf32>
    %19 = vector.broadcast %cst_6 : f32 to vector<8x128xf32>
    %20 = arith.minimumf %19, %18 : vector<8x128xf32>
    %cst_7 = arith.constant 5.000000e-01 : f32
    %21 = vector.broadcast %cst_7 : f32 to vector<8x128xf32>
    %22 = arith.mulf %20, %21 : vector<8x128xf32>
    %23 = arith.subf %16, %22 : vector<8x128xf32>
    %24 = arith.addf %23, %22 : vector<8x128xf32>
    %c0_8 = arith.constant 0 : index
    %25 = arith.index_cast %4 : i32 to index
    %c0_9 = arith.constant 0 : index
    %26 = vector.load %arg3[%c0_8, %25, %c0_9] : memref<8x8x128xf32, #tpu.memory_space<vmem>>, vector<1x8x128xf32>
    %27 = vector.shape_cast %26 : vector<1x8x128xf32> to vector<8x128xf32>
    %28 = vector.shape_cast %24 : vector<8x128xf32> to vector<1x8x128xf32>
    tpu.vector_store %arg3[%c0_8, %25, %c0_9], %28 {strides = array<i32>} : memref<8x8x128xf32, #tpu.memory_space<vmem>>, vector<1x8x128xf32>,
    %cst_10 = arith.constant 1.000000e+00 : f32
    %29 = vector.broadcast %cst_10 : f32 to vector<8x128xf32>
    %30 = arith.subf %29, %24 : vector<8x128xf32>
    %31 = arith.mulf %12, %30 : vector<8x128xf32>
    %cst_11 = arith.constant 2.500000e-01 : f32
    %32 = vector.broadcast %cst_11 : f32 to vector<8x128xf32>
    %33 = arith.mulf %31, %32 : vector<8x128xf32>
    %c1 = arith.constant 1 : index
    %34 = arith.index_cast %4 : i32 to index
    %c0_12 = arith.constant 0 : index
    %35 = vector.load %arg2[%c1, %34, %c0_12] : memref<8x8x128xf32, #tpu.memory_space<vmem>>, vector<1x8x128xf32>
    %36 = vector.shape_cast %35 : vector<1x8x128xf32> to vector<8x128xf32>
    %37 = arith.addf %33, %36 : vector<8x128xf32>
    %cst_13 = arith.constant 1.000000e+00 : f32
    %38 = vector.broadcast %cst_13 : f32 to vector<8x128xf32>
    %39 = arith.cmpf ogt, %37, %38 : vector<8x128xf32>
    %40 = arith.extui %39 : vector<8x128xi1> to vector<8x128xi32>
    %41 = arith.sitofp %40 : vector<8x128xi32> to vector<8x128xf32>
    %cst_14 = arith.constant 0.000000e+00 : f32
    %cst_15 = arith.constant 2.000000e+00 : f32
    %42 = vector.broadcast %cst_14 : f32 to vector<8x128xf32>
    %43 = arith.maximumf %42, %37 : vector<8x128xf32>
    %44 = vector.broadcast %cst_15 : f32 to vector<8x128xf32>
    %45 = arith.minimumf %44, %43 : vector<8x128xf32>
    %cst_16 = arith.constant 5.000000e-01 : f32
    %46 = vector.broadcast %cst_16 : f32 to vector<8x128xf32>
    %47 = arith.mulf %45, %46 : vector<8x128xf32>
    %48 = arith.subf %41, %47 : vector<8x128xf32>
    %49 = arith.addf %48, %47 : vector<8x128xf32>
    %c1_17 = arith.constant 1 : index
    %50 = arith.index_cast %4 : i32 to index
    %c0_18 = arith.constant 0 : index
    %51 = vector.load %arg3[%c1_17, %50, %c0_18] : memref<8x8x128xf32, #tpu.memory_space<vmem>>, vector<1x8x128xf32>
    %52 = vector.shape_cast %51 : vector<1x8x128xf32> to vector<8x128xf32>
    %53 = vector.shape_cast %49 : vector<8x128xf32> to vector<1x8x128xf32>
    tpu.vector_store %arg3[%c1_17, %50, %c0_18], %53 {strides = array<i32>} : memref<8x8x128xf32, #tpu.memory_space<vmem>>, vector<1x8x128xf32>,
    %cst_19 = arith.constant 1.000000e+00 : f32
    %54 = vector.broadcast %cst_19 : f32 to vector<8x128xf32>
    %55 = arith.subf %54, %49 : vector<8x128xf32>
    %56 = arith.mulf %37, %55 : vector<8x128xf32>
    %cst_20 = arith.constant 2.500000e-01 : f32
    %57 = vector.broadcast %cst_20 : f32 to vector<8x128xf32>
    %58 = arith.mulf %56, %57 : vector<8x128xf32>
    %c2 = arith.constant 2 : index
    %59 = arith.index_cast %4 : i32 to index
    %c0_21 = arith.constant 0 : index
    %60 = vector.load %arg2[%c2, %59, %c0_21] : memref<8x8x128xf32, #tpu.memory_space<vmem>>, vector<1x8x128xf32>
    %61 = vector.shape_cast %60 : vector<1x8x128xf32> to vector<8x128xf32>
    %62 = arith.addf %58, %61 : vector<8x128xf32>
    %cst_22 = arith.constant 1.000000e+00 : f32
    %63 = vector.broadcast %cst_22 : f32 to vector<8x128xf32>
    %64 = arith.cmpf ogt, %62, %63 : vector<8x128xf32>
    %65 = arith.extui %64 : vector<8x128xi1> to vector<8x128xi32>
    %66 = arith.sitofp %65 : vector<8x128xi32> to vector<8x128xf32>
    %cst_23 = arith.constant 0.000000e+00 : f32
    %cst_24 = arith.constant 2.000000e+00 : f32
    %67 = vector.broadcast %cst_23 : f32 to vector<8x128xf32>
    %68 = arith.maximumf %67, %62 : vector<8x128xf32>
    %69 = vector.broadcast %cst_24 : f32 to vector<8x128xf32>
    %70 = arith.minimumf %69, %68 : vector<8x128xf32>
    %cst_25 = arith.constant 5.000000e-01 : f32
    %71 = vector.broadcast %cst_25 : f32 to vector<8x128xf32>
    %72 = arith.mulf %70, %71 : vector<8x128xf32>
    %73 = arith.subf %66, %72 : vector<8x128xf32>
    %74 = arith.addf %73, %72 : vector<8x128xf32>
    %c2_26 = arith.constant 2 : index
    %75 = arith.index_cast %4 : i32 to index
    %c0_27 = arith.constant 0 : index
    %76 = vector.load %arg3[%c2_26, %75, %c0_27] : memref<8x8x128xf32, #tpu.memory_space<vmem>>, vector<1x8x128xf32>
    %77 = vector.shape_cast %76 : vector<1x8x128xf32> to vector<8x128xf32>
    %78 = vector.shape_cast %74 : vector<8x128xf32> to vector<1x8x128xf32>
    tpu.vector_store %arg3[%c2_26, %75, %c0_27], %78 {strides = array<i32>} : memref<8x8x128xf32, #tpu.memory_space<vmem>>, vector<1x8x128xf32>,
    %cst_28 = arith.constant 1.000000e+00 : f32
    %79 = vector.broadcast %cst_28 : f32 to vector<8x128xf32>
    %80 = arith.subf %79, %74 : vector<8x128xf32>
    %81 = arith.mulf %62, %80 : vector<8x128xf32>
    %cst_29 = arith.constant 2.500000e-01 : f32
    %82 = vector.broadcast %cst_29 : f32 to vector<8x128xf32>
    %83 = arith.mulf %81, %82 : vector<8x128xf32>
    %c3 = arith.constant 3 : index
    %84 = arith.index_cast %4 : i32 to index
    %c0_30 = arith.constant 0 : index
    %85 = vector.load %arg2[%c3, %84, %c0_30] : memref<8x8x128xf32, #tpu.memory_space<vmem>>, vector<1x8x128xf32>
    %86 = vector.shape_cast %85 : vector<1x8x128xf32> to vector<8x128xf32>
    %87 = arith.addf %83, %86 : vector<8x128xf32>
    %cst_31 = arith.constant 1.000000e+00 : f32
    %88 = vector.broadcast %cst_31 : f32 to vector<8x128xf32>
    %89 = arith.cmpf ogt, %87, %88 : vector<8x128xf32>
    %90 = arith.extui %89 : vector<8x128xi1> to vector<8x128xi32>
    %91 = arith.sitofp %90 : vector<8x128xi32> to vector<8x128xf32>
    %cst_32 = arith.constant 0.000000e+00 : f32
    %cst_33 = arith.constant 2.000000e+00 : f32
    %92 = vector.broadcast %cst_32 : f32 to vector<8x128xf32>
    %93 = arith.maximumf %92, %87 : vector<8x128xf32>
    %94 = vector.broadcast %cst_33 : f32 to vector<8x128xf32>
    %95 = arith.minimumf %94, %93 : vector<8x128xf32>
    %cst_34 = arith.constant 5.000000e-01 : f32
    %96 = vector.broadcast %cst_34 : f32 to vector<8x128xf32>
    %97 = arith.mulf %95, %96 : vector<8x128xf32>
    %98 = arith.subf %91, %97 : vector<8x128xf32>
    %99 = arith.addf %98, %97 : vector<8x128xf32>
    %c3_35 = arith.constant 3 : index
    %100 = arith.index_cast %4 : i32 to index
    %c0_36 = arith.constant 0 : index
    %101 = vector.load %arg3[%c3_35, %100, %c0_36] : memref<8x8x128xf32, #tpu.memory_space<vmem>>, vector<1x8x128xf32>
    %102 = vector.shape_cast %101 : vector<1x8x128xf32> to vector<8x128xf32>
    %103 = vector.shape_cast %99 : vector<8x128xf32> to vector<1x8x128xf32>
    tpu.vector_store %arg3[%c3_35, %100, %c0_36], %103 {strides = array<i32>} : memref<8x8x128xf32, #tpu.memory_space<vmem>>, vector<1x8x128xf32>,
    %cst_37 = arith.constant 1.000000e+00 : f32
    %104 = vector.broadcast %cst_37 : f32 to vector<8x128xf32>
    %105 = arith.subf %104, %99 : vector<8x128xf32>
    %106 = arith.mulf %87, %105 : vector<8x128xf32>
    %cst_38 = arith.constant 2.500000e-01 : f32
    %107 = vector.broadcast %cst_38 : f32 to vector<8x128xf32>
    %108 = arith.mulf %106, %107 : vector<8x128xf32>
    %c4 = arith.constant 4 : index
    %109 = arith.index_cast %4 : i32 to index
    %c0_39 = arith.constant 0 : index
    %110 = vector.load %arg2[%c4, %109, %c0_39] : memref<8x8x128xf32, #tpu.memory_space<vmem>>, vector<1x8x128xf32>
    %111 = vector.shape_cast %110 : vector<1x8x128xf32> to vector<8x128xf32>
    %112 = arith.addf %108, %111 : vector<8x128xf32>
    %cst_40 = arith.constant 1.000000e+00 : f32
    %113 = vector.broadcast %cst_40 : f32 to vector<8x128xf32>
    %114 = arith.cmpf ogt, %112, %113 : vector<8x128xf32>
    %115 = arith.extui %114 : vector<8x128xi1> to vector<8x128xi32>
    %116 = arith.sitofp %115 : vector<8x128xi32> to vector<8x128xf32>
    %cst_41 = arith.constant 0.000000e+00 : f32
    %cst_42 = arith.constant 2.000000e+00 : f32
    %117 = vector.broadcast %cst_41 : f32 to vector<8x128xf32>
    %118 = arith.maximumf %117, %112 : vector<8x128xf32>
    %119 = vector.broadcast %cst_42 : f32 to vector<8x128xf32>
    %120 = arith.minimumf %119, %118 : vector<8x128xf32>
    %cst_43 = arith.constant 5.000000e-01 : f32
    %121 = vector.broadcast %cst_43 : f32 to vector<8x128xf32>
    %122 = arith.mulf %120, %121 : vector<8x128xf32>
    %123 = arith.subf %116, %122 : vector<8x128xf32>
    %124 = arith.addf %123, %122 : vector<8x128xf32>
    %c4_44 = arith.constant 4 : index
    %125 = arith.index_cast %4 : i32 to index
    %c0_45 = arith.constant 0 : index
    %126 = vector.load %arg3[%c4_44, %125, %c0_45] : memref<8x8x128xf32, #tpu.memory_space<vmem>>, vector<1x8x128xf32>
    %127 = vector.shape_cast %126 : vector<1x8x128xf32> to vector<8x128xf32>
    %128 = vector.shape_cast %124 : vector<8x128xf32> to vector<1x8x128xf32>
    tpu.vector_store %arg3[%c4_44, %125, %c0_45], %128 {strides = array<i32>} : memref<8x8x128xf32, #tpu.memory_space<vmem>>, vector<1x8x128xf32>,
    %cst_46 = arith.constant 1.000000e+00 : f32
    %129 = vector.broadcast %cst_46 : f32 to vector<8x128xf32>
    %130 = arith.subf %129, %124 : vector<8x128xf32>
    %131 = arith.mulf %112, %130 : vector<8x128xf32>
    %cst_47 = arith.constant 2.500000e-01 : f32
    %132 = vector.broadcast %cst_47 : f32 to vector<8x128xf32>
    %133 = arith.mulf %131, %132 : vector<8x128xf32>
    %c5 = arith.constant 5 : index
    %134 = arith.index_cast %4 : i32 to index
    %c0_48 = arith.constant 0 : index
    %135 = vector.load %arg2[%c5, %134, %c0_48] : memref<8x8x128xf32, #tpu.memory_space<vmem>>, vector<1x8x128xf32>
    %136 = vector.shape_cast %135 : vector<1x8x128xf32> to vector<8x128xf32>
    %137 = arith.addf %133, %136 : vector<8x128xf32>
    %cst_49 = arith.constant 1.000000e+00 : f32
    %138 = vector.broadcast %cst_49 : f32 to vector<8x128xf32>
    %139 = arith.cmpf ogt, %137, %138 : vector<8x128xf32>
    %140 = arith.extui %139 : vector<8x128xi1> to vector<8x128xi32>
    %141 = arith.sitofp %140 : vector<8x128xi32> to vector<8x128xf32>
    %cst_50 = arith.constant 0.000000e+00 : f32
    %cst_51 = arith.constant 2.000000e+00 : f32
    %142 = vector.broadcast %cst_50 : f32 to vector<8x128xf32>
    %143 = arith.maximumf %142, %137 : vector<8x128xf32>
    %144 = vector.broadcast %cst_51 : f32 to vector<8x128xf32>
    %145 = arith.minimumf %144, %143 : vector<8x128xf32>
    %cst_52 = arith.constant 5.000000e-01 : f32
    %146 = vector.broadcast %cst_52 : f32 to vector<8x128xf32>
    %147 = arith.mulf %145, %146 : vector<8x128xf32>
    %148 = arith.subf %141, %147 : vector<8x128xf32>
    %149 = arith.addf %148, %147 : vector<8x128xf32>
    %c5_53 = arith.constant 5 : index
    %150 = arith.index_cast %4 : i32 to index
    %c0_54 = arith.constant 0 : index
    %151 = vector.load %arg3[%c5_53, %150, %c0_54] : memref<8x8x128xf32, #tpu.memory_space<vmem>>, vector<1x8x128xf32>
    %152 = vector.shape_cast %151 : vector<1x8x128xf32> to vector<8x128xf32>
    %153 = vector.shape_cast %149 : vector<8x128xf32> to vector<1x8x128xf32>
    tpu.vector_store %arg3[%c5_53, %150, %c0_54], %153 {strides = array<i32>} : memref<8x8x128xf32, #tpu.memory_space<vmem>>, vector<1x8x128xf32>,
    %cst_55 = arith.constant 1.000000e+00 : f32
    %154 = vector.broadcast %cst_55 : f32 to vector<8x128xf32>
    %155 = arith.subf %154, %149 : vector<8x128xf32>
    %156 = arith.mulf %137, %155 : vector<8x128xf32>
    %cst_56 = arith.constant 2.500000e-01 : f32
    %157 = vector.broadcast %cst_56 : f32 to vector<8x128xf32>
    %158 = arith.mulf %156, %157 : vector<8x128xf32>
    %c6 = arith.constant 6 : index
    %159 = arith.index_cast %4 : i32 to index
    %c0_57 = arith.constant 0 : index
    %160 = vector.load %arg2[%c6, %159, %c0_57] : memref<8x8x128xf32, #tpu.memory_space<vmem>>, vector<1x8x128xf32>
    %161 = vector.shape_cast %160 : vector<1x8x128xf32> to vector<8x128xf32>
    %162 = arith.addf %158, %161 : vector<8x128xf32>
    %cst_58 = arith.constant 1.000000e+00 : f32
    %163 = vector.broadcast %cst_58 : f32 to vector<8x128xf32>
    %164 = arith.cmpf ogt, %162, %163 : vector<8x128xf32>
    %165 = arith.extui %164 : vector<8x128xi1> to vector<8x128xi32>
    %166 = arith.sitofp %165 : vector<8x128xi32> to vector<8x128xf32>
    %cst_59 = arith.constant 0.000000e+00 : f32
    %cst_60 = arith.constant 2.000000e+00 : f32
    %167 = vector.broadcast %cst_59 : f32 to vector<8x128xf32>
    %168 = arith.maximumf %167, %162 : vector<8x128xf32>
    %169 = vector.broadcast %cst_60 : f32 to vector<8x128xf32>
    %170 = arith.minimumf %169, %168 : vector<8x128xf32>
    %cst_61 = arith.constant 5.000000e-01 : f32
    %171 = vector.broadcast %cst_61 : f32 to vector<8x128xf32>
    %172 = arith.mulf %170, %171 : vector<8x128xf32>
    %173 = arith.subf %166, %172 : vector<8x128xf32>
    %174 = arith.addf %173, %172 : vector<8x128xf32>
    %c6_62 = arith.constant 6 : index
    %175 = arith.index_cast %4 : i32 to index
    %c0_63 = arith.constant 0 : index
    %176 = vector.load %arg3[%c6_62, %175, %c0_63] : memref<8x8x128xf32, #tpu.memory_space<vmem>>, vector<1x8x128xf32>
    %177 = vector.shape_cast %176 : vector<1x8x128xf32> to vector<8x128xf32>
    %178 = vector.shape_cast %174 : vector<8x128xf32> to vector<1x8x128xf32>
    tpu.vector_store %arg3[%c6_62, %175, %c0_63], %178 {strides = array<i32>} : memref<8x8x128xf32, #tpu.memory_space<vmem>>, vector<1x8x128xf32>,
    %cst_64 = arith.constant 1.000000e+00 : f32
    %179 = vector.broadcast %cst_64 : f32 to vector<8x128xf32>
    %180 = arith.subf %179, %174 : vector<8x128xf32>
    %181 = arith.mulf %162, %180 : vector<8x128xf32>
    %cst_65 = arith.constant 2.500000e-01 : f32
    %182 = vector.broadcast %cst_65 : f32 to vector<8x128xf32>
    %183 = arith.mulf %181, %182 : vector<8x128xf32>
    %c7 = arith.constant 7 : index
    %184 = arith.index_cast %4 : i32 to index
    %c0_66 = arith.constant 0 : index
    %185 = vector.load %arg2[%c7, %184, %c0_66] : memref<8x8x128xf32, #tpu.memory_space<vmem>>, vector<1x8x128xf32>
    %186 = vector.shape_cast %185 : vector<1x8x128xf32> to vector<8x128xf32>
    %187 = arith.addf %183, %186 : vector<8x128xf32>
    %cst_67 = arith.constant 1.000000e+00 : f32
    %188 = vector.broadcast %cst_67 : f32 to vector<8x128xf32>
    %189 = arith.cmpf ogt, %187, %188 : vector<8x128xf32>
    %190 = arith.extui %189 : vector<8x128xi1> to vector<8x128xi32>
    %191 = arith.sitofp %190 : vector<8x128xi32> to vector<8x128xf32>
    %cst_68 = arith.constant 0.000000e+00 : f32
    %cst_69 = arith.constant 2.000000e+00 : f32
    %192 = vector.broadcast %cst_68 : f32 to vector<8x128xf32>
    %193 = arith.maximumf %192, %187 : vector<8x128xf32>
    %194 = vector.broadcast %cst_69 : f32 to vector<8x128xf32>
    %195 = arith.minimumf %194, %193 : vector<8x128xf32>
    %cst_70 = arith.constant 5.000000e-01 : f32
    %196 = vector.broadcast %cst_70 : f32 to vector<8x128xf32>
    %197 = arith.mulf %195, %196 : vector<8x128xf32>
    %198 = arith.subf %191, %197 : vector<8x128xf32>
    %199 = arith.addf %198, %197 : vector<8x128xf32>
    %c7_71 = arith.constant 7 : index
    %200 = arith.index_cast %4 : i32 to index
    %c0_72 = arith.constant 0 : index
    %201 = vector.load %arg3[%c7_71, %200, %c0_72] : memref<8x8x128xf32, #tpu.memory_space<vmem>>, vector<1x8x128xf32>
    %202 = vector.shape_cast %201 : vector<1x8x128xf32> to vector<8x128xf32>
    %203 = vector.shape_cast %199 : vector<8x128xf32> to vector<1x8x128xf32>
    tpu.vector_store %arg3[%c7_71, %200, %c0_72], %203 {strides = array<i32>} : memref<8x8x128xf32, #tpu.memory_space<vmem>>, vector<1x8x128xf32>,
    %cst_73 = arith.constant 1.000000e+00 : f32
    %204 = vector.broadcast %cst_73 : f32 to vector<8x128xf32>
    %205 = arith.subf %204, %199 : vector<8x128xf32>
    %206 = arith.mulf %187, %205 : vector<8x128xf32>
    %207 = arith.index_cast %4 : i32 to index
    %c0_74 = arith.constant 0 : index
    %208 = vector.load %arg4[%207, %c0_74] : memref<8x128xf32, #tpu.memory_space<vmem>>, vector<8x128xf32>
    tpu.vector_store %arg4[%207, %c0_74], %206 {strides = array<i32>} : memref<8x128xf32, #tpu.memory_space<vmem>>, vector<8x128xf32>,
    %c1_i32 = arith.constant 1 : i32
    return
  }
  func.func @transform_0(%arg0: i32, %arg1: i32) -> (i32, i32, i32) {
    %c0_i32 = arith.constant 0 : i32
    %c0_i32_0 = arith.constant 0 : i32
    return %arg1, %arg0, %c0_i32 : i32, i32, i32
  }
  func.func @transform_1(%arg0: i32, %arg1: i32) -> (i32, i32, i32) {
    %c0_i32 = arith.constant 0 : i32
    %c0_i32_0 = arith.constant 0 : i32
    return %arg1, %arg0, %c0_i32 : i32, i32, i32
  }
}

</mosaic_0001>

<llo_original>
// kernel: tpu_custom_call.1
$region0: #{tpu_custom_call.1}
  #allocation0 [shape = 'u32[]', space=smem, size = 0x4, offset = 0x4, fixed_abs, tag = 'smem constant byte address 0x4 - core index']
  #allocation1 [shape = 'u32[144,128]{1,0:T(1,128)}', space=vmem, size = 0x12000, scoped, tag = 'internal scratch']
  #allocation2 [shape = 'f32[8,128]{1,0:T(8,128)}', space=vmem, size = 0x1000, scoped, tag = 'scratch operand']
  %s0 = inlined_call_operand.hbm [shape: f32[8,16,128], index: 0, kind: input, shape index: {}]
  %s1 = inlined_call_operand.hbm [shape: f32[8,16,128], index: 1, kind: output, shape index: {}]
  %s2 = sld [smem:[#allocation0]]
  $region45: #{tpu_custom_call.1} parent=0
    _
  %s4 = ssub.s32 1, %s2
  %s5 = scalar_select 0, %s4, %s2
  $region1: #{tpu_custom_call.1} parent=0
    #allocation3 [shape = 'u8[65536]{0}', space=vmem, size = 0x10000, scoped, tag = 'input window, operand 0']
    #allocation4 [shape = 's32[2]{0}', space=sflag, size = 0x8, scoped, tag = 'scoped memory for tpu_custom_call.1']
    #allocation5 [shape = 's32[2]{0}', space=sflag, size = 0x8, scoped, tag = 'scoped memory for tpu_custom_call.1']
    #allocation6 [shape = 'u8[65536]{0}', space=vmem, size = 0x10000, scoped, tag = 'output window, operand 0']
    %6 = vsyncpa [#allocation4], 0
    %s7 = scalar_lea.sflag [#allocation4], 1
    %8 = vsyncpa %s7, 0
    %9 = vsyncpa [#allocation5], 0
    %s10 = scalar_lea.sflag [#allocation5], 1
    %11 = vsyncpa %s10, 0
    loop: start=0, step=1, limit=4
    $region2: #{tpu_custom_call.1} parent=1 // loop_pre_header
      _
    $region3: #{tpu_custom_call.1} parent=1 // loop_header
      %s13 = sphi 0, %s17
      %p14 = scmp.ge.s32.totalorder %s13, 4
      %s20 = sphi 0, %s32
      %s21 = sphi 0, %s28
      %s22 = sphi 0, %s20
      %s23 = sphi 0, %s21
      %s24 = sphi 0, %s22
      %s25 = sphi 0, %s23
      %s37 = sphi 0, %s39
      %s40 = sphi 0, %s37
      %s41 = sphi 0, %s40
      %s57 = sphi 0, %s41
      %s65 = sphi 0, %s67
      %s68 = sphi 0, %s65
      %s69 = sphi 0, %s68
      %s85 = sphi 0, %s69
    $region4: #{tpu_custom_call.1} parent=1 // loop_header_branch
      %16 = sbr.rel (%p14) target = $region8
    $region5: #{tpu_custom_call.1} parent=1 // loop_body
      %s18 = ssub.s32 %s13, 1
      %s19 = ssub.s32 %s13, 2
      %s26 = sadd.s32 1, %s21
      %p27 = scmp.ge.s32.totalorder %s26, 1
      %s28 = scalar_select %p27, 0, %s26
      %s29 = sadd.s32 1, %s20
      %s30 = scalar_select %p27, %s29, %s20
      %p31 = scmp.ge.s32.totalorder %s30, 2
      %s32 = scalar_select %p31, 0, %s30
      %s33 = ssub.s32 %s21, %s28
      %s34 = ssub.s32 %s20, %s32
      %s35 = sor.u32 %s33, %s34
      %p36 = scmp.eq.s32.totalorder %s35, 0
      %s38 = sadd.s32 %s37, 1
      %s39 = scalar_select %p36, %s37, %s38
      %p42 = pneg %p36
      %p43 = scmp.eq.s32.totalorder %s13, 1
      %p44 = por %p42, %p43
      %p45 = scmp.ne.s32.totalorder %s37, %s40
      %p46 = scmp.eq.s32.totalorder %s13, 0
      %p47 = por %p45, %p46
      %p48 = scmp.ne.s32.totalorder %s37, %s40
      %p49 = scmp.eq.s32.totalorder %s18, 1
      %p50 = por %p48, %p49
      %p51 = scmp.ne.s32.totalorder %s40, %s41
      %p52 = scmp.eq.s32.totalorder %s18, 0
      %p53 = por %p51, %p52
      %p54 = scmp.ne.s32.totalorder %s40, %s41
      %p55 = scmp.eq.s32.totalorder %s19, 1
      %p56 = por %p54, %p55
      %p58 = scmp.ne.s32.totalorder %s41, %s57
      %p59 = scmp.eq.s32.totalorder %s19, 0
      %p60 = por %p58, %p59
      %s61 = ssub.s32 %s21, %s28
      %s62 = ssub.s32 %s20, %s32
      %s63 = sor.u32 %s61, %s62
      %p64 = scmp.eq.s32.totalorder %s63, 0
      %s66 = sadd.s32 %s65, 1
      %s67 = scalar_select %p64, %s65, %s66
      %p70 = pneg %p64
      %p71 = scmp.eq.s32.totalorder %s13, 1
      %p72 = por %p70, %p71
      %p73 = scmp.ne.s32.totalorder %s65, %s68
      %p74 = scmp.eq.s32.totalorder %s13, 0
      %p75 = por %p73, %p74
      %p76 = scmp.ne.s32.totalorder %s65, %s68
      %p77 = scmp.eq.s32.totalorder %s18, 1
      %p78 = por %p76, %p77
      %p79 = scmp.ne.s32.totalorder %s68, %s69
      %p80 = scmp.eq.s32.totalorder %s18, 0
      %p81 = por %p79, %p80
      %p82 = scmp.ne.s32.totalorder %s68, %s69
      %p83 = scmp.eq.s32.totalorder %s19, 1
      %p84 = por %p82, %p83
      %p86 = scmp.ne.s32.totalorder %s69, %s85
      %p87 = scmp.eq.s32.totalorder %s19, 0
      %p88 = por %p86, %p87
      %p89 = scmp.le.s32.totalorder 1, %s13
      %p90 = scmp.lt.s32.totalorder %s13, 3
      %p91 = pnand %p89, %p90
      %p92 = pneg %p91
      // Predicated region
      $region9: #{tpu_custom_call.1} parent=5 // pred_check
        _
      $region10: #{tpu_custom_call.1} parent=5 // pred_check_branch
        %94 = sbr.rel (%p91) target = $region12
      $region11: #{tpu_custom_call.1} parent=5 // pred_region
        %s95 = ssub.s32 %s13, 1
      $region12: #{tpu_custom_call.1} parent=5 // pred_fallthru
        _
      %p96 = scmp.lt.s32.totalorder %s13, 2
      // Predicated region
      $region13: #{tpu_custom_call.1} parent=5 // pred_check
        %p97 = pneg %p96
      $region14: #{tpu_custom_call.1} parent=5 // pred_check_branch
        %99 = sbr.rel (%p97) target = $region16
      $region15: #{tpu_custom_call.1} parent=5 // pred_region
        // Predicated region
        $region17: #{tpu_custom_call.1} parent=15 // pred_check
          %p100 = pneg %p47
        $region18: #{tpu_custom_call.1} parent=15 // pred_check_branch
          %102 = sbr.rel (%p100) target = $region20
        $region19: #{tpu_custom_call.1} parent=15 // pred_region
          %s103 = sand.u32 %s37, 1
          %s104 = scalar_lea.sflag [#allocation4], %s103
          %s105 = sand.u32 %s37, 1
          %s106 = smul.addr %s105, 64
          %s107 = scalar_lea.vmem [#allocation3], %s106
          %s108 = smul.u32 8, %s21
          %s110 = ssub.s32 1024, 1024
          %111 = vsyncadd %s104, %s110
          %s112 = smul.addr %s108, 2
          %s113 = sadd.s32 %s20, %s112
          %s114 = smul.addr %s113, 128
          %s115 = scalar_lea.hbm %s0, %s114
          %s116 = sshll.u32 %s107, 4
          %s117 = int_to_ptr.vmem [resolvable:$true] %s116
          %122 = dma.hbm_to_vmem [thread:$0]  %s115, 1024, %s117, %s104, 256, 128, 8
        $region20: #{tpu_custom_call.1} parent=15 // pred_fallthru
          _
      $region16: #{tpu_custom_call.1} parent=5 // pred_fallthru
        _
      %p123 = scmp.le.s32.totalorder 1, %s13
      %p124 = scmp.lt.s32.totalorder %s13, 3
      %p125 = pnand %p123, %p124
      %p126 = pneg %p125
      // Predicated region
      $region21: #{tpu_custom_call.1} parent=5 // pred_check
        _
      $region22: #{tpu_custom_call.1} parent=5 // pred_check_branch
        %128 = sbr.rel (%p125) target = $region24
      $region23: #{tpu_custom_call.1} parent=5 // pred_region
        %s129 = ssub.s32 %s13, 1
        %s130 = sand.u32 %s40, 1
        %s131 = scalar_lea.sflag [#allocation4], %s130
        %s132 = sand.u32 %s40, 1
        %s133 = smul.addr %s132, 64
        %s134 = scalar_lea.vmem [#allocation3], %s133
        // Predicated region
        $region25: #{tpu_custom_call.1} parent=23 // pred_check
          %p135 = pneg %p53
        $region26: #{tpu_custom_call.1} parent=23 // pred_check_branch
          %137 = sbr.rel (%p135) target = $region28
        $region27: #{tpu_custom_call.1} parent=23 // pred_region
          %138 = dma.done %s131, 1024
        $region28: #{tpu_custom_call.1} parent=23 // pred_fallthru
          _
        %s139 = sand.u32 %s40, 1
        %s140 = scalar_lea.sflag [#allocation4], %s139
        %s141 = sand.u32 %s40, 1
        %s142 = smul.addr %s141, 64
        %s143 = scalar_lea.vmem [#allocation3], %s142
        %p144 = pneg %p53
        %p145 = pneg %p50
        %p146 = pneg %p81
        %p147 = pneg %p78
        %s148 = sand.u32 %s68, 1
        %s149 = scalar_lea.sflag [#allocation5], %s148
        %s150 = sand.u32 %s68, 1
        %s151 = smul.addr %s150, 64
        %s152 = scalar_lea.vmem [#allocation6], %s151
        %s153 = smul.u32 8, %s23
        %s154 = smul.u32 8, %s23
        %p155 = scmp.eq.s32.totalorder %s23, 0
        // Predicated region
        $region29: #{tpu_custom_call.1} parent=23 // pred_check
          %p156 = pneg %p155
        $region30: #{tpu_custom_call.1} parent=23 // pred_check_branch
          %158 = sbr.rel (%p156) target = $region32
        $region31: #{tpu_custom_call.1} parent=23 // pred_region
          %159 = vst [vmem:[#allocation2] sm:$0xff] 0.0
        $region32: #{tpu_custom_call.1} parent=23 // pred_fallthru
          _
        %v160 = vld [vmem:[#allocation2] sm:$0xff]
        %v161 = vmul.f32 %v160, 0.25
        %v162 = vld [vmem:[%s134] sm:$0xff]
        %v163 = vadd.f32 %v161, %v162
        %vm164 = vcmp.gt.f32.partialorder %v163, 1.0
        %v165 = vsel %vm164, 1, 0
        %v166 = vcvt.s32.f32 %v165
        %v167 = vmax.f32 %v163, 0.0
        %v168 = vmin.f32 %v167, 2.0
        %v169 = vmul.f32 %v168, 0.5
        %v170 = vsub.f32 %v166, %v169
        %v171 = vadd.f32 %v170, %v169
        %172 = vst [vmem:[%s152] sm:$0xff] %v171
        %v173 = vsub.f32 1.0, %v171
        %v174 = vmul.f32 %v163, %v173
        %v175 = vmul.f32 %v174, 0.25
        %s176 = sadd.s32 0, 8
        %s177 = scalar_lea.vmem %s134, %s176 [#allocation3]
        %v178 = vld [vmem:[%s177] sm:$0xff]
        %v179 = vadd.f32 %v175, %v178
        %vm180 = vcmp.gt.f32.partialorder %v179, 1.0
        %v181 = vsel %vm180, 1, 0
        %v182 = vcvt.s32.f32 %v181
        %v183 = vmax.f32 %v179, 0.0
        %v184 = vmin.f32 %v183, 2.0
        %v185 = vmul.f32 %v184, 0.5
        %v186 = vsub.f32 %v182, %v185
        %v187 = vadd.f32 %v186, %v185
        %s188 = scalar_lea.vmem %s152, %s176 [#allocation6]
        %189 = vst [vmem:[%s188] sm:$0xff] %v187
        %v190 = vsub.f32 1.0, %v187
        %v191 = vmul.f32 %v179, %v190
        %v192 = vmul.f32 %v191, 0.25
        %s193 = sadd.s32 0, 16
        %s194 = scalar_lea.vmem %s134, %s193 [#allocation3]
        %v195 = vld [vmem:[%s194] sm:$0xff]
        %v196 = vadd.f32 %v192, %v195
        %vm197 = vcmp.gt.f32.partialorder %v196, 1.0
        %v198 = vsel %vm197, 1, 0
        %v199 = vcvt.s32.f32 %v198
        %v200 = vmax.f32 %v196, 0.0
        %v201 = vmin.f32 %v200, 2.0
        %v202 = vmul.f32 %v201, 0.5
        %v203 = vsub.f32 %v199, %v202
        %v204 = vadd.f32 %v203, %v202
        %s205 = scalar_lea.vmem %s152, %s193 [#allocation6]
        %206 = vst [vmem:[%s205] sm:$0xff] %v204
        %v207 = vsub.f32 1.0, %v204
        %v208 = vmul.f32 %v196, %v207
        %v209 = vmul.f32 %v208, 0.25
        %s210 = sadd.s32 0, 24
        %s211 = scalar_lea.vmem %s134, %s210 [#allocation3]
        %v212 = vld [vmem:[%s211] sm:$0xff]
        %v213 = vadd.f32 %v209, %v212
        %vm214 = vcmp.gt.f32.partialorder %v213, 1.0
        %v215 = vsel %vm214, 1, 0
        %v216 = vcvt.s32.f32 %v215
        %v217 = vmax.f32 %v213, 0.0
        %v218 = vmin.f32 %v217, 2.0
        %v219 = vmul.f32 %v218, 0.5
        %v220 = vsub.f32 %v216, %v219
        %v221 = vadd.f32 %v220, %v219
        %s222 = scalar_lea.vmem %s152, %s210 [#allocation6]
        %223 = vst [vmem:[%s222] sm:$0xff] %v221
        %v224 = vsub.f32 1.0, %v221
        %v225 = vmul.f32 %v213, %v224
        %v226 = vmul.f32 %v225, 0.25
        %s227 = sadd.s32 0, 32
        %s228 = scalar_lea.vmem %s134, %s227 [#allocation3]
        %v229 = vld [vmem:[%s228] sm:$0xff]
        %v230 = vadd.f32 %v226, %v229
        %vm231 = vcmp.gt.f32.partialorder %v230, 1.0
        %v232 = vsel %vm231, 1, 0
        %v233 = vcvt.s32.f32 %v232
        %v234 = vmax.f32 %v230, 0.0
        %v235 = vmin.f32 %v234, 2.0
        %v236 = vmul.f32 %v235, 0.5
        %v237 = vsub.f32 %v233, %v236
        %v238 = vadd.f32 %v237, %v236
        %s239 = scalar_lea.vmem %s152, %s227 [#allocation6]
        %240 = vst [vmem:[%s239] sm:$0xff] %v238
        %v241 = vsub.f32 1.0, %v238
        %v242 = vmul.f32 %v230, %v241
        %v243 = vmul.f32 %v242, 0.25
        %s244 = sadd.s32 0, 40
        %s245 = scalar_lea.vmem %s134, %s244 [#allocation3]
        %v246 = vld [vmem:[%s245] sm:$0xff]
        %v247 = vadd.f32 %v243, %v246
        %vm248 = vcmp.gt.f32.partialorder %v247, 1.0
        %v249 = vsel %vm248, 1, 0
        %v250 = vcvt.s32.f32 %v249
        %v251 = vmax.f32 %v247, 0.0
        %v252 = vmin.f32 %v251, 2.0
        %v253 = vmul.f32 %v252, 0.5
        %v254 = vsub.f32 %v250, %v253
        %v255 = vadd.f32 %v254, %v253
        %s256 = scalar_lea.vmem %s152, %s244 [#allocation6]
        %257 = vst [vmem:[%s256] sm:$0xff] %v255
        %v258 = vsub.f32 1.0, %v255
        %v259 = vmul.f32 %v247, %v258
        %v260 = vmul.f32 %v259, 0.25
        %s261 = sadd.s32 0, 48
        %s262 = scalar_lea.vmem %s134, %s261 [#allocation3]
        %v263 = vld [vmem:[%s262] sm:$0xff]
        %v264 = vadd.f32 %v260, %v263
        %vm265 = vcmp.gt.f32.partialorder %v264, 1.0
        %v266 = vsel %vm265, 1, 0
        %v267 = vcvt.s32.f32 %v266
        %v268 = vmax.f32 %v264, 0.0
        %v269 = vmin.f32 %v268, 2.0
        %v270 = vmul.f32 %v269, 0.5
        %v271 = vsub.f32 %v267, %v270
        %v272 = vadd.f32 %v271, %v270
        %s273 = scalar_lea.vmem %s152, %s261 [#allocation6]
        %274 = vst [vmem:[%s273] sm:$0xff] %v272
        %v275 = vsub.f32 1.0, %v272
        %v276 = vmul.f32 %v264, %v275
        %v277 = vmul.f32 %v276, 0.25
        %s278 = sadd.s32 0, 56
        %s279 = scalar_lea.vmem %s134, %s278 [#allocation3]
        %v280 = vld [vmem:[%s279] sm:$0xff]
        %v281 = vadd.f32 %v277, %v280
        %vm282 = vcmp.gt.f32.partialorder %v281, 1.0
        %v283 = vsel %vm282, 1, 0
        %v284 = vcvt.s32.f32 %v283
        %v285 = vmax.f32 %v281, 0.0
        %v286 = vmin.f32 %v285, 2.0
        %v287 = vmul.f32 %v286, 0.5
        %v288 = vsub.f32 %v284, %v287
        %v289 = vadd.f32 %v288, %v287
        %s290 = scalar_lea.vmem %s152, %s278 [#allocation6]
        %291 = vst [vmem:[%s290] sm:$0xff] %v289
        %v292 = vsub.f32 1.0, %v289
        %v293 = vmul.f32 %v281, %v292
        %294 = vst [vmem:[#allocation2] sm:$0xff] %v293
        %s295 = sand.u32 %s68, 1
        %s296 = scalar_lea.sflag [#allocation5], %s295
        %s297 = sand.u32 %s68, 1
        %s298 = smul.addr %s297, 64
        %s299 = scalar_lea.vmem [#allocation6], %s298
        // Predicated region
        $region33: #{tpu_custom_call.1} parent=23 // pred_check
          %p300 = pneg %p78
        $region34: #{tpu_custom_call.1} parent=23 // pred_check_branch
          %302 = sbr.rel (%p300) target = $region36
        $region35: #{tpu_custom_call.1} parent=23 // pred_region
          %s303 = smul.u32 8, %s23
          %s305 = ssub.s32 1024, 1024
          %306 = vsyncadd %s296, %s305
          %s307 = smul.addr %s303, 2
          %s308 = sadd.s32 %s22, %s307
          %s309 = smul.addr %s308, 128
          %s310 = scalar_lea.hbm %s1, %s309
          %s311 = sshll.u32 %s299, 4
          %s312 = int_to_ptr.vmem [resolvable:$true] %s311
          %317 = dma.vmem_to_hbm [thread:$0]  %s312, 1024, %s310, %s296, 128, 256, 8
        $region36: #{tpu_custom_call.1} parent=23 // pred_fallthru
          _
      $region24: #{tpu_custom_call.1} parent=5 // pred_fallthru
        _
      %p318 = scmp.le.s32.totalorder 2, %s13
      // Predicated region
      $region37: #{tpu_custom_call.1} parent=5 // pred_check
        %p319 = pneg %p318
      $region38: #{tpu_custom_call.1} parent=5 // pred_check_branch
        %321 = sbr.rel (%p319) target = $region40
      $region39: #{tpu_custom_call.1} parent=5 // pred_region
        %s322 = ssub.s32 %s13, 2
        // Predicated region
        $region41: #{tpu_custom_call.1} parent=39 // pred_check
          %p323 = pneg %p84
        $region42: #{tpu_custom_call.1} parent=39 // pred_check_branch
          %325 = sbr.rel (%p323) target = $region44
        $region43: #{tpu_custom_call.1} parent=39 // pred_region
          %s326 = sand.u32 %s69, 1
          %s327 = scalar_lea.sflag [#allocation5], %s326
          %s328 = sand.u32 %s69, 1
          %s329 = smul.addr %s328, 64
          %s330 = scalar_lea.vmem [#allocation6], %s329
          %331 = dma.done %s327, 1024
        $region44: #{tpu_custom_call.1} parent=39 // pred_fallthru
          _
      $region40: #{tpu_custom_call.1} parent=5 // pred_fallthru
        _
    $region6: #{tpu_custom_call.1} parent=1 // loop_footer
      %s17 = sadd.s32 1, %s13
    $region7: #{tpu_custom_call.1} parent=1 // loop_footer_branch
      %12 = sbr.rel target = $region3
    $region8: #{tpu_custom_call.1} parent=1 // loop_exit
      _
    %332 = vsyncpa [#allocation4], 1
    %s333 = scalar_lea.sflag [#allocation4], 1
    %334 = vsyncpa %s333, 1
    %335 = vsyncpa [#allocation5], 1
    %s336 = scalar_lea.sflag [#allocation5], 1
    %337 = vsyncpa %s336, 1

</llo_original>
